<compile_context>
chip_gen: v5e
topology: v5e:2x2
jax: 0.10.0
libtpu: 0.0.40
codegen_flags: <defaults>
</compile_context>

<pallas_src>
import jax
import jax.numpy as jnp
from jax.experimental import pallas as pl
from jax.experimental.pallas import tpu as pltpu

_LANE = 128


# ---------------------------------------------------------------------------
# Kernels
# ---------------------------------------------------------------------------

def _copy_slab_kernel(x_ref, o_ref):
    # Pure data movement: one lane-dense (row_tile, lanes) slab through VMEM.
    o_ref[...] = x_ref[...]


def _copy_dma_kernel(x_hbm, o_hbm, sem):
    # Direct HBM->HBM copy: no VMEM staging, no lane-alignment requirement.
    cp = pltpu.make_async_copy(x_hbm, o_hbm, sem)
    cp.start()
    cp.wait()


# ---------------------------------------------------------------------------
# Tiling heuristics
# ---------------------------------------------------------------------------

def _generation_config():
    """(per-buffer budget bytes, vmem_limit_bytes or None, min grid steps)."""
    kind = ""
    try:
        kind = jax.devices()[0].device_kind.lower()
    except Exception:  # defensive: no devices during tracing on exotic setups
        pass
    if "v7" in kind:
        # 2 TCs, 64 MiB VMEM/TC, 3.2 TB/s HBM: bigger tiles amortize per-step
        # overhead; 4 buffers x 8 MiB = 32 MiB needs the scoped limit raised.
        return 8 << 20, 48 << 20, 4
    if "v6" in kind:
        # 4 buffers x 4 MiB = 16 MiB, well under the 32 MiB scoped default.
        return 4 << 20, None, 1
    # v5e (16 MiB scoped default) and unknown chips: conservative so four
    # double-buffered buffers (12 MiB) leave headroom for Mosaic scratch.
    return 3 << 20, None, 1


def _sublane_rows(dtype) -> int:
    # Rows per vreg sublane group for packed dtypes (f32/bf16/int8).
    return {4: 8, 2: 16, 1: 32}.get(jnp.dtype(dtype).itemsize, 8)


def _pick_lanes(n: int) -> int:
    """Pick a multiple-of-128 lane width dividing n (requires n % 128 == 0)."""
    for lanes in (1024, 512, 256, _LANE):
        if n % lanes == 0:
            return lanes
    return _LANE  # unreachable when n % 128 == 0


def _pick_row_tile(rows: int, lanes: int, dtype, budget_bytes: int,
                   min_steps: int, total_bytes: int) -> int:
    sub = _sublane_rows(dtype)
    row_bytes = lanes * jnp.dtype(dtype).itemsize
    # Largest sublane-aligned tile within the per-buffer VMEM budget.
    tr = max((budget_bytes // row_bytes) // sub * sub, sub)
    # On multi-core chips (v7x), make sure bandwidth-bound arrays still give a
    # grid with >= min_steps steps so "parallel" can shard across both TCs.
    if min_steps > 1 and total_bytes >= (2 << 20) and rows > sub:
        cap = max((pl.cdiv(rows, min_steps) // sub) * sub, sub)
        tr = min(tr, cap)
    return rows if tr >= rows else tr


# ---------------------------------------------------------------------------
# Pallas copy paths (opt-in; the default forward is a free reshape)
# ---------------------------------------------------------------------------

def _pallas_copy_slab(x_flat: jax.Array, row_tile: int | None = None) -> jax.Array:
    n = x_flat.shape[0]
    budget, vmem_limit, min_steps = _generation_config()

    lanes = _pick_lanes(n)
    rows = n // lanes
    slab = x_flat.reshape(rows, lanes)          # metadata-only (contiguous)

    if row_tile is None:
        itemsize = jnp.dtype(slab.dtype).itemsize
        tr = _pick_row_tile(rows, lanes, slab.dtype, budget, min_steps,
                            n * itemsize)
    else:
        # Test-only override; keep it sublane-aligned unless it covers rows.
        sub = _sublane_rows(slab.dtype)
        tr = max(int(row_tile), 1)
        tr = rows if tr >= rows else max((tr // sub) * sub, sub)

    grid = (pl.cdiv(rows, tr),)

    cp_kwargs = dict(dimension_semantics=("parallel",))
    if vmem_limit is not None:
        cp_kwargs["vmem_limit_bytes"] = vmem_limit

    out = pl.pallas_call(
        _copy_slab_kernel,
        out_shape=jax.ShapeDtypeStruct((rows, lanes), slab.dtype),
        grid_spec=pltpu.PrefetchScalarGridSpec(
            num_scalar_prefetch=0,
            grid=grid,
            in_specs=[pl.BlockSpec((tr, lanes), lambda i: (i, 0))],
            out_specs=pl.BlockSpec((tr, lanes), lambda i: (i, 0)),
        ),
        compiler_params=pltpu.CompilerParams(**cp_kwargs),
    )(slab)
    return out.reshape(n)


def _pallas_copy_dma(x_flat: jax.Array) -> jax.Array:
    # Whole-array HBM->HBM DMA: simplest way to sit at the HBM roofline for a
    # memcpy, independent of shape / dtype / VMEM budget.
    return pl.pallas_call(
        _copy_dma_kernel,
        out_shape=jax.ShapeDtypeStruct(x_flat.shape, x_flat.dtype),
        in_specs=[pl.BlockSpec(memory_space=pl.ANY)],
        out_specs=pl.BlockSpec(memory_space=pl.ANY),
        scratch_shapes=[pltpu.SemaphoreType.DMA(())],
    )(x_flat)


# ---------------------------------------------------------------------------
# Public wrapper (matches UnFlatten.forward semantics)
# ---------------------------------------------------------------------------

def unflatten(x: jax.Array, size: int = 1024, *,
              use_pallas_copy: bool = False,
              row_tile: int | None = None) -> jax.Array:
    """Pallas/JAX equivalent of UnFlatten.forward: x.view(B, size, 1, 1)."""
    b = x.shape[0]
    if x.size != b * size:
        raise ValueError(
            f"cannot view array with {x.size} elements as ({b}, {size}, 1, 1)")
    out_shape = (b, size, 1, 1)

    if not use_pallas_copy:
        # Recommended path: metadata-only reshape, zero HBM traffic, no kernel.
        return x.reshape(out_shape)

    x_flat = x.reshape(-1)                      # metadata-only for contiguous x
    n = x_flat.shape[0]
    if n % _LANE == 0:
        out_flat = _pallas_copy_slab(x_flat, row_tile=row_tile)
    else:
        # No lane-dense factorization (e.g. size=10): direct HBM->HBM DMA
        # avoids masked partial stores and VMEM tiling altogether.
        out_flat = _pallas_copy_dma(x_flat)
    return out_flat.reshape(out_shape)


if __name__ == "__main__":
    key = jax.random.PRNGKey(0)
    k0, k1, k2 = jax.random.split(key, 3)

    # Shape implied by the module: a (B, C, H, W) feature map with
    # C*H*W == size, viewed as (B, size, 1, 1).
    B, C, H, W = 2, 4, 16, 16
    SIZE = C * H * W  # 1024
    x = jax.random.normal(k0, (B, C, H, W), dtype=jnp.float32)
    ref = x.reshape(B, SIZE, 1, 1)

    # 1) Default fast path: metadata-only reshape (no pallas_call).
    out_fast = unflatten(x, size=SIZE)
    jax.block_until_ready(out_fast)
    assert out_fast.shape == (B, SIZE, 1, 1)
    assert jnp.array_equal(out_fast, ref)

    # 2) Opt-in Pallas copy: auto-picked lane-dense slab tiling.
    out_copy = unflatten(x, size=SIZE, use_pallas_copy=True)
    jax.block_until_ready(out_copy)
    assert out_copy.shape == (B, SIZE, 1, 1)
    assert out_copy.dtype == x.dtype
    assert jnp.array_equal(out_copy, ref)

    # 3) Multi-step-grid exercise (test-only row_tile override; production
    #    call sites should rely on the auto-picked tile).
    xb = jax.random.normal(k1, (64, SIZE), dtype=jnp.float32)
    out_tiled = unflatten(xb, size=SIZE, use_pallas_copy=True, row_tile=8)
    jax.block_until_ready(out_tiled)
    assert jnp.array_equal(out_tiled, xb.reshape(64, SIZE, 1, 1))

    # 4) Non-128-multiple element count -> direct HBM->HBM DMA copy path.
    xs = jax.random.normal(k2, (3, 10), dtype=jnp.float32)
    out_dma = unflatten(xs, size=10, use_pallas_copy=True)
    jax.block_until_ready(out_dma)
    assert out_dma.shape == (3, 10, 1, 1)
    assert jnp.array_equal(out_dma, xs.reshape(3, 10, 1, 1))

    print("KERNEL_OK")
</pallas_src>

<mosaic_0001>
module attributes {stable_mosaic.version = 11 : i64} {
  func.func @_copy_slab_kernel(%arg0: i32, %arg1: memref<2x1024xf32, #tpu.memory_space<vmem>>, %arg2: memref<2x1024xf32, #tpu.memory_space<vmem>>) attributes {dimension_semantics = [#tpu.dimension_semantics<parallel>], iteration_bounds = array<i64: 1>, scalar_prefetch = 0 : i64, scratch_operands = 0 : i64, tpu.core_type = #tpu.core_type<tc>, window_params = [{transform_indices = @transform_0, window_bounds = array<i64: 2, 1024>}, {transform_indices = @transform_1, window_bounds = array<i64: 2, 1024>}]} {
    %c0 = arith.constant 0 : index
    %c0_0 = arith.constant 0 : index
    %0 = vector.load %arg1[%c0, %c0_0] : memref<2x1024xf32, #tpu.memory_space<vmem>>, vector<2x1024xf32>
    %c0_1 = arith.constant 0 : index
    %c0_2 = arith.constant 0 : index
    %1 = vector.load %arg2[%c0_1, %c0_2] : memref<2x1024xf32, #tpu.memory_space<vmem>>, vector<2x1024xf32>
    tpu.vector_store %arg2[%c0_1, %c0_2], %0 {strides = array<i32>} : memref<2x1024xf32, #tpu.memory_space<vmem>>, vector<2x1024xf32>,
    return
  }
  func.func @transform_0(%arg0: i32) -> (i32, i32) {
    %c0_i32 = arith.constant 0 : i32
    %c0_i32_0 = arith.constant 0 : i32
    return %arg0, %c0_i32 : i32, i32
  }
  func.func @transform_1(%arg0: i32) -> (i32, i32) {
    %c0_i32 = arith.constant 0 : i32
    %c0_i32_0 = arith.constant 0 : i32
    return %arg0, %c0_i32 : i32, i32
  }
}

</mosaic_0001>

<llo_original>
// kernel: tpu_custom_call.1
$region0: #{tpu_custom_call.1}
  #allocation0 [shape = 'u32[]', space=smem, size = 0x4, offset = 0x4, fixed_abs, tag = 'smem constant byte address 0x4 - core index']
  #allocation1 [shape = 'u32[72,128]{1,0:T(1,128)}', space=vmem, size = 0x9000, scoped, tag = 'internal scratch']
  %s0 = inlined_call_operand.hbm [shape: f32[2,1024], index: 0, kind: input, shape index: {}]
  %s1 = inlined_call_operand.hbm [shape: f32[2,1024], index: 1, kind: output, shape index: {}]
  %s2 = sld [smem:[#allocation0]]
  $region18: #{tpu_custom_call.1} parent=0
    _
  %s4 = ssub.s32 1, %s2
  %s5 = scalar_select 0, %s4, %s2
  $region1: #{tpu_custom_call.1} parent=0
    #allocation2 [shape = 'u8[8192]{0}', space=vmem, size = 0x2000, scoped, tag = 'input window, operand 0, single buffered']
    #allocation3 [shape = 's32[1]{0}', space=sflag, size = 0x4, scoped, tag = 'scoped memory for tpu_custom_call.1']
    #allocation4 [shape = 's32[1]{0}', space=sflag, size = 0x4, scoped, tag = 'scoped memory for tpu_custom_call.1']
    #allocation5 [shape = 'u8[8192]{0}', space=vmem, size = 0x2000, scoped, tag = 'output window, operand 0, single buffered']
    %6 = vsyncpa [#allocation3], 0
    %7 = vsyncpa [#allocation4], 0
    // Predicated region
    $region2: #{tpu_custom_call.1} parent=1 // pred_check
      _
    $region3: #{tpu_custom_call.1} parent=1 // pred_check_branch
      %9 = sbr.rel (0) target = $region5
    $region4: #{tpu_custom_call.1} parent=1 // pred_region
      %11 = vsyncadd [#allocation3], 0
      %s13 = sshll.u32 %s0, 4
      %s14 = int_to_ptr.hbm [resolvable:$true] %s13
      %s15 = sshll.u32 [#allocation2], 4
      %s16 = int_to_ptr.vmem [resolvable:$true] %s15
      %18 = dma.hbm_to_vmem [thread:$0]  %s14, 256, %s16, [#allocation3]
    $region5: #{tpu_custom_call.1} parent=1 // pred_fallthru
      _
    // Predicated region
    $region6: #{tpu_custom_call.1} parent=1 // pred_check
      _
    $region7: #{tpu_custom_call.1} parent=1 // pred_check_branch
      %20 = sbr.rel (0) target = $region9
    $region8: #{tpu_custom_call.1} parent=1 // pred_region
      %22 = dma.done [#allocation3], 256
    $region9: #{tpu_custom_call.1} parent=1 // pred_fallthru
      _
    %v23 = vld [vmem:[#allocation2] sm:$0xff]
    %v24 = vld [vmem:[#allocation2 + $0x8] sm:$0xff]
    %25 = vst [vmem:[#allocation5] sm:$0xff] %v23
    %26 = vst [vmem:[#allocation5 + $0x8] sm:$0xff] %v24
    // Predicated region
    $region10: #{tpu_custom_call.1} parent=1 // pred_check
      _
    $region11: #{tpu_custom_call.1} parent=1 // pred_check_branch
      %28 = sbr.rel (0) target = $region13
    $region12: #{tpu_custom_call.1} parent=1 // pred_region
      %30 = vsyncadd [#allocation4], 0
      %s32 = sshll.u32 [#allocation5], 4
      %s33 = int_to_ptr.vmem [resolvable:$true] %s32
      %s34 = sshll.u32 %s1, 4
      %s35 = int_to_ptr.hbm [resolvable:$true] %s34
      %37 = dma.vmem_to_hbm [thread:$0]  %s33, 256, %s35, [#allocation4]
    $region13: #{tpu_custom_call.1} parent=1 // pred_fallthru
      _
    // Predicated region
    $region14: #{tpu_custom_call.1} parent=1 // pred_check
      _
    $region15: #{tpu_custom_call.1} parent=1 // pred_check_branch
      %39 = sbr.rel (0) target = $region17
    $region16: #{tpu_custom_call.1} parent=1 // pred_region
      %41 = dma.done [#allocation4], 256
    $region17: #{tpu_custom_call.1} parent=1 // pred_fallthru
      _
    %42 = vsyncpa [#allocation3], 1
    %43 = vsyncpa [#allocation4], 1

</llo_original>
